<compile_context>
chip_gen: v7x
topology: tpu7x:2x2x1
jax: 0.10.0
libtpu: 0.0.40
codegen_flags: <defaults>
</compile_context>

<pallas_src>
import jax
import jax.numpy as jnp
from jax import lax
from jax.experimental import pallas as pl
from jax.experimental.pallas import tpu as pltpu

_LANES = 128
_SUBLANES = 8


def _round_up(x: int, m: int) -> int:
    return ((x + m - 1) // m) * m


def _multicore_hint() -> bool:
    """True on chips whose TensorCores can usefully split a 'parallel' axis."""
    try:
        kind = jax.devices()[0].device_kind.lower()
    except Exception:
        return False
    return any(tag in kind for tag in ("v4", "v5p", "v7", "7x"))


def _make_qfocal_kernel(*, gamma, alpha, total, block_rows, blocks_per_part,
                        acc_rows):
    gamma = float(gamma)
    alpha = float(alpha)
    inv_total = 1.0 / float(total)           # Python float, baked as constant
    full_rows = total // _LANES              # rows that are entirely valid
    rem = total - full_rows * _LANES         # valid lanes of the partial row

    # Specialize |x|**gamma at trace time to avoid exp(gamma*log(x)).
    if gamma == 2.0:
        pow_gamma = lambda x: x * x
    elif gamma == 1.5:
        pow_gamma = lambda x: x * jnp.sqrt(x)
    elif gamma == 1.0:
        pow_gamma = lambda x: x
    elif gamma == 0.5:
        pow_gamma = lambda x: jnp.sqrt(x)
    else:
        pow_gamma = lambda x: jnp.power(x, gamma)

    def kernel(pred_ref, true_ref, out_ref, acc_ref):
        c = pl.program_id(0)   # core-split axis ("parallel")
        i = pl.program_id(1)   # reduction axis ("arbitrary")

        @pl.when(i == 0)
        def _():
            acc_ref[...] = jnp.zeros_like(acc_ref)

        p = pred_ref[...].astype(jnp.float32)
        t = true_ref[...].astype(jnp.float32)

        # One shared EUP exp drives both the stable BCE and the sigmoid.
        e = jnp.exp(-jnp.abs(p))                        # exp(-|p|) in (0, 1]
        # Numerically stable BCE-with-logits (reduction='none'):
        #   max(p, 0) - p*t + log1p(exp(-|p|))
        bce = jnp.maximum(p, 0.0) - p * t + jnp.log1p(e)
        r = pl.reciprocal(1.0 + e)                      # exact; keeps 1e-5 rtol
        pred_prob = jnp.where(p >= 0.0, r, e * r)       # sigmoid(p)

        # alpha*t + (1-alpha)*(1-t) == (1-alpha) + (2*alpha-1)*t  (one FMA).
        alpha_factor = (1.0 - alpha) + (2.0 * alpha - 1.0) * t
        modulating_factor = pow_gamma(jnp.abs(t - pred_prob))
        loss = bce * alpha_factor * modulating_factor

        gb = c * blocks_per_part + i                    # linear block index
        # Does this block reach past the last valid element?
        needs_mask = (gb + 1) * block_rows > full_rows

        def fold(x):
            # Layout-preserving fold onto the (acc_rows, 128) accumulator:
            # pure VPU adds (acc_rows=64 -> 8 independent add chains), no
            # cross-lane traffic in the hot loop.
            return x.reshape(-1, acc_rows, _LANES).sum(axis=0)

        @pl.when(jnp.logical_not(needs_mask))
        def _():
            acc_ref[...] += fold(loss)

        @pl.when(needs_mask)
        def _():
            # Cold path (edge blocks only): mask everything past the original
            # element count.  Covers the wrapper's small zero pad, the ragged
            # last block, and the clamped duplicate block of an uneven 2-core
            # split.  jnp.where also discards any NaN/Inf computed on padding.
            row_g = gb * block_rows + lax.broadcasted_iota(
                jnp.int32, loss.shape, 0)
            mask = row_g < full_rows
            if rem:
                lane = lax.broadcasted_iota(jnp.int32, loss.shape, 1)
                mask = mask | ((row_g == full_rows) & (lane < rem))
            acc_ref[...] += fold(jnp.where(mask, loss, 0.0))

        @pl.when(i == pl.num_programs(1) - 1)
        def _():
            # Per-core, lane-dense partial of the global mean.
            out_ref[...] = (acc_ref[...] * inv_total).reshape(
                1, acc_rows, _LANES)

    return kernel


def qfocal_loss(pred, true, gamma=1.5, alpha=0.25, block_rows=8192):
    """Quality focal loss with BCEWithLogitsLoss(reduction='mean') semantics."""
    assert pred.shape == true.shape
    total = int(pred.size)
    if total == 0:
        return jnp.float32(float("nan"))  # torch: mean over empty tensor

    pred_flat = pred.reshape(-1)
    true_flat = true.reshape(-1)  # kept in its HBM dtype; kernel upcasts per tile

    # Only a ragged tail (if any) is zero-padded so the flat array reshapes to
    # (rows, 128) with rows a multiple of 8; padded elements are masked in the
    # kernel, and the common case (size % 1024 == 0) does no copy at all.
    padded_total = _round_up(total, _SUBLANES * _LANES)
    pad = padded_total - total
    if pad:
        pred_flat = jnp.pad(pred_flat, (0, pad))
        true_flat = jnp.pad(true_flat, (0, pad))

    rows = padded_total // _LANES                       # multiple of 8
    # Row-block size: multiple of 32 (safe sublane packing for f32/bf16/int8),
    # capped at the full row count for small inputs.
    block_rows = max(32, _round_up(int(block_rows), 32))
    block_rows = min(block_rows, rows) if rows >= 32 else rows
    n_blocks = (rows + block_rows - 1) // block_rows

    # Split row blocks over 2 TensorCores only where that can help (v7x /
    # megacore); single-TC chips (v5e/v6e) keep the simple 1-part grid.
    num_parts = 2 if (_multicore_hint() and n_blocks >= 2) else 1
    blocks_per_part = (n_blocks + num_parts - 1) // num_parts

    # Wider accumulator (8 vregs) when the block allows it -> 8 independent
    # add chains instead of one long serial chain.
    acc_rows = 64 if block_rows % 64 == 0 else _SUBLANES

    pred2d = pred_flat.reshape(rows, _LANES)
    true2d = true_flat.reshape(rows, _LANES)

    kernel = _make_qfocal_kernel(
        gamma=gamma, alpha=alpha, total=total, block_rows=block_rows,
        blocks_per_part=blocks_per_part, acc_rows=acc_rows)

    def in_map(c, i, bpp=blocks_per_part, last=n_blocks - 1):
        # Clamp so the extra block of an uneven 2-core split re-reads the last
        # valid block instead of running off the array; the kernel masks its
        # contribution to exactly zero.
        return (jnp.minimum(c * bpp + i, last), 0)

    partials = pl.pallas_call(
        kernel,
        out_shape=jax.ShapeDtypeStruct((num_parts, acc_rows, _LANES),
                                       jnp.float32),
        grid_spec=pltpu.PrefetchScalarGridSpec(
            num_scalar_prefetch=0,
            grid=(num_parts, blocks_per_part),
            in_specs=[
                pl.BlockSpec((block_rows, _LANES), in_map),
                pl.BlockSpec((block_rows, _LANES), in_map),
            ],
            out_specs=pl.BlockSpec((1, acc_rows, _LANES),
                                   lambda c, i: (c, 0, 0)),
            scratch_shapes=[pltpu.VMEM((acc_rows, _LANES), jnp.float32)],
        ),
        compiler_params=pltpu.CompilerParams(
            dimension_semantics=("parallel", "arbitrary"),
            vmem_limit_bytes=40 * 1024 * 1024,
        ),
    )(pred2d, true2d)

    # Tiny epilogue reduction (<= 2*64*128 f32) in plain XLA: the sum of the
    # per-core, per-lane partial means is the global mean.
    return jnp.sum(partials)


def qfocal_loss_ref(pred, true, gamma=1.5, alpha=0.25):
    p = pred.astype(jnp.float32)
    t = true.astype(jnp.float32)
    bce = jnp.maximum(p, 0.0) - p * t + jnp.log1p(jnp.exp(-jnp.abs(p)))
    prob = jax.nn.sigmoid(p)
    af = t * alpha + (1.0 - t) * (1.0 - alpha)
    mf = jnp.abs(t - prob) ** gamma
    return jnp.mean(bce * af * mf)


if __name__ == "__main__":
    key = jax.random.PRNGKey(0)
    k1, k2, k3, k4 = jax.random.split(key, 4)

    # NCHW-shaped logits and targets, as a detector head would produce.
    shape = (2, 4, 16, 16)
    pred = jax.random.normal(k1, shape, dtype=jnp.float32)
    true = (jax.random.uniform(k2, shape) > 0.7).astype(jnp.float32)

    out = jax.block_until_ready(qfocal_loss(pred, true, gamma=1.5, alpha=0.25))
    ref = qfocal_loss_ref(pred, true, gamma=1.5, alpha=0.25)
    assert jnp.allclose(out, ref, rtol=1e-5, atol=1e-6), (out, ref)

    # Ragged size (105 elements) exercising the in-kernel tail masking path.
    shape2 = (3, 5, 7)
    pred2 = jax.random.normal(k3, shape2, dtype=jnp.float32)
    true2 = jax.random.uniform(k4, shape2, dtype=jnp.float32)
    out2 = jax.block_until_ready(qfocal_loss(pred2, true2, gamma=2.0, alpha=0.25))
    ref2 = qfocal_loss_ref(pred2, true2, gamma=2.0, alpha=0.25)
    assert jnp.allclose(out2, ref2, rtol=1e-5, atol=1e-6), (out2, ref2)

    print("KERNEL_OK")
</pallas_src>

<mosaic_0001>
module attributes {stable_mosaic.version = 11 : i64} {
  func.func @kernel(%arg0: i32, %arg1: i32, %arg2: memref<16x128xf32, #tpu.memory_space<vmem>>, %arg3: memref<16x128xf32, #tpu.memory_space<vmem>>, %arg4: memref<1x8x128xf32, #tpu.memory_space<vmem>>, %arg5: memref<8x128xf32, #tpu.memory_space<vmem>>) attributes {dimension_semantics = [#tpu.dimension_semantics<parallel>, #tpu.dimension_semantics<arbitrary>], iteration_bounds = array<i64: 1, 1>, scalar_prefetch = 0 : i64, scratch_operands = 1 : i64, tpu.core_type = #tpu.core_type<tc>, window_params = [{transform_indices = @transform_0, window_bounds = array<i64: 16, 128>}, {transform_indices = @transform_1, window_bounds = array<i64: 16, 128>}, {transform_indices = @transform_2, window_bounds = array<i64: 1, 8, 128>}]} {
    %c0_i32 = arith.constant 0 : i32
    %0 = arith.cmpi eq, %arg1, %c0_i32 : i32
    %1 = arith.extui %0 : i1 to i32
    %c0_i32_0 = arith.constant 0 : i32
    %2 = arith.cmpi ne, %1, %c0_i32_0 : i32
    scf.if %2 {
      %cst_15 = arith.constant 0.000000e+00 : f32
      %45 = vector.broadcast %cst_15 : f32 to vector<8x128xf32>
      %c0_16 = arith.constant 0 : index
      %c0_17 = arith.constant 0 : index
      %46 = vector.load %arg5[%c0_16, %c0_17] : memref<8x128xf32, #tpu.memory_space<vmem>>, vector<8x128xf32>
      tpu.vector_store %arg5[%c0_16, %c0_17], %45 {strides = array<i32>} : memref<8x128xf32, #tpu.memory_space<vmem>>, vector<8x128xf32>,
    } else {
    }
    %c0 = arith.constant 0 : index
    %c0_1 = arith.constant 0 : index
    %3 = vector.load %arg2[%c0, %c0_1] : memref<16x128xf32, #tpu.memory_space<vmem>>, vector<16x128xf32>
    %c0_2 = arith.constant 0 : index
    %c0_3 = arith.constant 0 : index
    %4 = vector.load %arg3[%c0_2, %c0_3] : memref<16x128xf32, #tpu.memory_space<vmem>>, vector<16x128xf32>
    %5 = math.absf %3 : vector<16x128xf32>
    %cst = arith.constant 0.000000e+00 : f32
    %6 = vector.broadcast %cst : f32 to vector<16x128xf32>
    %7 = arith.subf %6, %5 : vector<16x128xf32>
    %8 = math.exp %7 : vector<16x128xf32>
    %cst_4 = arith.constant 0.000000e+00 : f32
    %9 = vector.broadcast %cst_4 : f32 to vector<16x128xf32>
    %10 = arith.maximumf %3, %9 : vector<16x128xf32>
    %11 = arith.mulf %3, %4 : vector<16x128xf32>
    %12 = arith.subf %10, %11 : vector<16x128xf32>
    %13 = math.log1p %8 : vector<16x128xf32>
    %14 = arith.addf %12, %13 : vector<16x128xf32>
    %cst_5 = arith.constant 1.000000e+00 : f32
    %15 = vector.broadcast %cst_5 : f32 to vector<16x128xf32>
    %16 = arith.addf %15, %8 : vector<16x128xf32>
    %17 = tpu.reciprocal %16 : vector<16x128xf32> -> vector<16x128xf32>
    %cst_6 = arith.constant 0.000000e+00 : f32
    %18 = vector.broadcast %cst_6 : f32 to vector<16x128xf32>
    %19 = arith.cmpf oge, %3, %18 : vector<16x128xf32>
    %20 = arith.mulf %8, %17 : vector<16x128xf32>
    %21 = arith.select %19, %17, %20 : vector<16x128xi1>, vector<16x128xf32>
    %cst_7 = arith.constant -5.000000e-01 : f32
    %22 = vector.broadcast %cst_7 : f32 to vector<16x128xf32>
    %23 = arith.mulf %22, %4 : vector<16x128xf32>
    %cst_8 = arith.constant 7.500000e-01 : f32
    %24 = vector.broadcast %cst_8 : f32 to vector<16x128xf32>
    %25 = arith.addf %24, %23 : vector<16x128xf32>
    %26 = arith.subf %4, %21 : vector<16x128xf32>
    %27 = math.absf %26 : vector<16x128xf32>
    %28 = math.sqrt %27 : vector<16x128xf32>
    %29 = arith.mulf %27, %28 : vector<16x128xf32>
    %30 = arith.mulf %14, %25 : vector<16x128xf32>
    %31 = arith.mulf %30, %29 : vector<16x128xf32>
    %c1_i32 = arith.constant 1 : i32
    %32 = arith.muli %arg0, %c1_i32 : i32
    %33 = arith.addi %32, %arg1 : i32
    %c1_i32_9 = arith.constant 1 : i32
    %34 = arith.addi %33, %c1_i32_9 : i32
    %c16_i32 = arith.constant 16 : i32
    %35 = arith.muli %34, %c16_i32 : i32
    %c16_i32_10 = arith.constant 16 : i32
    %36 = arith.cmpi sgt, %35, %c16_i32_10 : i32
    %true = arith.constant true
    %37 = arith.xori %36, %true : i1
    %38 = arith.extui %37 : i1 to i32
    %c0_i32_11 = arith.constant 0 : i32
    %39 = arith.cmpi ne, %38, %c0_i32_11 : i32
    scf.if %39 {
      %c0_15 = arith.constant 0 : index
      %c0_16 = arith.constant 0 : index
      %45 = vector.load %arg5[%c0_15, %c0_16] : memref<8x128xf32, #tpu.memory_space<vmem>>, vector<8x128xf32>
      %46 = vector.shape_cast %31 : vector<16x128xf32> to vector<2x8x128xf32>
      %cst_17 = arith.constant dense<0.000000e+00> : vector<8x128xf32>
      %47 = vector.multi_reduction <add>, %46, %cst_17 [0] : vector<2x8x128xf32> to vector<8x128xf32>
      %48 = arith.addf %45, %47 : vector<8x128xf32>
      %c0_18 = arith.constant 0 : index
      %c0_19 = arith.constant 0 : index
      %49 = vector.load %arg5[%c0_18, %c0_19] : memref<8x128xf32, #tpu.memory_space<vmem>>, vector<8x128xf32>
      tpu.vector_store %arg5[%c0_18, %c0_19], %48 {strides = array<i32>} : memref<8x128xf32, #tpu.memory_space<vmem>>, vector<8x128xf32>,
    } else {
    }
    %40 = arith.extui %36 : i1 to i32
    %c0_i32_12 = arith.constant 0 : i32
    %41 = arith.cmpi ne, %40, %c0_i32_12 : i32
    scf.if %41 {
      %c16_i32_15 = arith.constant 16 : i32
      %45 = arith.muli %33, %c16_i32_15 : i32
      %46 = tpu.iota {dimensions = array<i32: 0>} : vector<16x128xi32>
      %47 = vector.broadcast %45 : i32 to vector<16x128xi32>
      %48 = arith.addi %47, %46 : vector<16x128xi32>
      %c16_i32_16 = arith.constant 16 : i32
      %49 = vector.broadcast %c16_i32_16 : i32 to vector<16x128xi32>
      %50 = arith.cmpi slt, %48, %49 : vector<16x128xi32>
      %c0_17 = arith.constant 0 : index
      %c0_18 = arith.constant 0 : index
      %51 = vector.load %arg5[%c0_17, %c0_18] : memref<8x128xf32, #tpu.memory_space<vmem>>, vector<8x128xf32>
      %cst_19 = arith.constant 0.000000e+00 : f32
      %52 = vector.broadcast %cst_19 : f32 to vector<16x128xf32>
      %53 = arith.select %50, %31, %52 : vector<16x128xi1>, vector<16x128xf32>
      %54 = vector.shape_cast %53 : vector<16x128xf32> to vector<2x8x128xf32>
      %cst_20 = arith.constant dense<0.000000e+00> : vector<8x128xf32>
      %55 = vector.multi_reduction <add>, %54, %cst_20 [0] : vector<2x8x128xf32> to vector<8x128xf32>
      %56 = arith.addf %51, %55 : vector<8x128xf32>
      %c0_21 = arith.constant 0 : index
      %c0_22 = arith.constant 0 : index
      %57 = vector.load %arg5[%c0_21, %c0_22] : memref<8x128xf32, #tpu.memory_space<vmem>>, vector<8x128xf32>
      tpu.vector_store %arg5[%c0_21, %c0_22], %56 {strides = array<i32>} : memref<8x128xf32, #tpu.memory_space<vmem>>, vector<8x128xf32>,
    } else {
    }
    %c0_i32_13 = arith.constant 0 : i32
    %42 = arith.cmpi eq, %arg1, %c0_i32_13 : i32
    %43 = arith.extui %42 : i1 to i32
    %c0_i32_14 = arith.constant 0 : i32
    %44 = arith.cmpi ne, %43, %c0_i32_14 : i32
    scf.if %44 {
      %c0_15 = arith.constant 0 : index
      %c0_16 = arith.constant 0 : index
      %45 = vector.load %arg5[%c0_15, %c0_16] : memref<8x128xf32, #tpu.memory_space<vmem>>, vector<8x128xf32>
      %cst_17 = arith.constant 4.8828125E-4 : f32
      %46 = vector.broadcast %cst_17 : f32 to vector<8x128xf32>
      %47 = arith.mulf %45, %46 : vector<8x128xf32>
      %48 = vector.shape_cast %47 : vector<8x128xf32> to vector<1x8x128xf32>
      %c0_18 = arith.constant 0 : index
      %c0_19 = arith.constant 0 : index
      %c0_20 = arith.constant 0 : index
      %49 = vector.load %arg4[%c0_18, %c0_19, %c0_20] : memref<1x8x128xf32, #tpu.memory_space<vmem>>, vector<1x8x128xf32>
      tpu.vector_store %arg4[%c0_18, %c0_19, %c0_20], %48 {strides = array<i32>} : memref<1x8x128xf32, #tpu.memory_space<vmem>>, vector<1x8x128xf32>,
    } else {
    }
    return
  }
  func.func @transform_0(%arg0: i32, %arg1: i32) -> (i32, i32) {
    %c1_i32 = arith.constant 1 : i32
    %0 = arith.muli %arg0, %c1_i32 : i32
    %1 = arith.addi %0, %arg1 : i32
    %c0_i32 = arith.constant 0 : i32
    %2 = arith.minsi %1, %c0_i32 : i32
    %c0_i32_0 = arith.constant 0 : i32
    %c0_i32_1 = arith.constant 0 : i32
    return %2, %c0_i32_0 : i32, i32
  }
  func.func @transform_1(%arg0: i32, %arg1: i32) -> (i32, i32) {
    %c1_i32 = arith.constant 1 : i32
    %0 = arith.muli %arg0, %c1_i32 : i32
    %1 = arith.addi %0, %arg1 : i32
    %c0_i32 = arith.constant 0 : i32
    %2 = arith.minsi %1, %c0_i32 : i32
    %c0_i32_0 = arith.constant 0 : i32
    %c0_i32_1 = arith.constant 0 : i32
    return %2, %c0_i32_0 : i32, i32
  }
  func.func @transform_2(%arg0: i32, %arg1: i32) -> (i32, i32, i32) {
    %c0_i32 = arith.constant 0 : i32
    %c0_i32_0 = arith.constant 0 : i32
    %c0_i32_1 = arith.constant 0 : i32
    return %arg0, %c0_i32, %c0_i32_0 : i32, i32, i32
  }
}

</mosaic_0001>

<llo_original>
// kernel: tpu_custom_call.1
$region0: #{tpu_custom_call.1}
  #allocation0 [shape = 'u32[]', space=smem, size = 0x4, offset = 0x4, fixed_abs, tag = 'smem constant byte address 0x4 - core index']
  #allocation1 [shape = 'u32[144,128]{1,0:T(1,128)}', space=vmem, size = 0x12000, scoped, tag = 'internal scratch']
  #allocation2 [shape = 'f32[8,128]{1,0:T(8,128)}', space=vmem, size = 0x1000, scoped, tag = 'scratch operand']
  %s0 = inlined_call_operand.hbm [shape: f32[16,128], index: 0, kind: input, shape index: {}]
  %s1 = inlined_call_operand.hbm [shape: f32[16,128], index: 1, kind: input, shape index: {}]
  %s2 = inlined_call_operand.hbm [shape: f32[1,8,128], index: 2, kind: output, shape index: {}]
  %s3 = sld [smem:[#allocation0]]
  $region42: #{tpu_custom_call.1} parent=0
    _
  %s5 = ssub.s32 1, %s3
  %s6 = scalar_select 0, %s5, %s3
  $region1: #{tpu_custom_call.1} parent=0
    #allocation3 [shape = 'u8[8192]{0}', space=vmem, size = 0x2000, scoped, tag = 'input window, operand 0, single buffered']
    #allocation4 [shape = 's32[1]{0}', space=sflag, size = 0x4, scoped, tag = 'scoped memory for tpu_custom_call.1']
    #allocation5 [shape = 's32[1]{0}', space=sflag, size = 0x4, scoped, tag = 'scoped memory for tpu_custom_call.1']
    #allocation6 [shape = 'u8[8192]{0}', space=vmem, size = 0x2000, scoped, tag = 'input window, operand 1, single buffered']
    #allocation7 [shape = 's32[1]{0}', space=sflag, size = 0x4, scoped, tag = 'scoped memory for tpu_custom_call.1']
    #allocation8 [shape = 'u8[4096]{0}', space=vmem, size = 0x1000, scoped, tag = 'output window, operand 0, single buffered']
    %7 = vsyncpa [#allocation4], 0
    %8 = vsyncpa [#allocation7], 0
    %9 = vsyncpa [#allocation5], 0
    // Predicated region
    $region2: #{tpu_custom_call.1} parent=1 // pred_check
      _
    $region3: #{tpu_custom_call.1} parent=1 // pred_check_branch
      %11 = sbr.rel (0) target = $region5
    $region4: #{tpu_custom_call.1} parent=1 // pred_region
      %s12 = sadd.s32 0, 0
      %p13 = scmp.lt.s32.totalorder %s12, 0
      %s14 = scalar_select %p13, %s12, 0
      %s15 = smul.u32 2, %s14
      %s17 = ssub.s32 256, 256
      %18 = vsyncadd [#allocation4], %s17
      %s19 = smul.addr %s15, 128
      %s20 = scalar_lea.hbm %s0, %s19
      %s21 = sshll.u32 [#allocation3], 4
      %s22 = int_to_ptr.vmem [resolvable:$true] %s21
      %27 = dma.hbm_to_vmem [thread:$0]  %s20, 256, %s22, [#allocation4], 128, 128, 8
    $region5: #{tpu_custom_call.1} parent=1 // pred_fallthru
      _
    // Predicated region
    $region6: #{tpu_custom_call.1} parent=1 // pred_check
      _
    $region7: #{tpu_custom_call.1} parent=1 // pred_check_branch
      %29 = sbr.rel (0) target = $region9
    $region8: #{tpu_custom_call.1} parent=1 // pred_region
      %s30 = sadd.s32 0, 0
      %p31 = scmp.lt.s32.totalorder %s30, 0
      %s32 = scalar_select %p31, %s30, 0
      %s33 = smul.u32 2, %s32
      %s35 = ssub.s32 256, 256
      %36 = vsyncadd [#allocation7], %s35
      %s37 = smul.addr %s33, 128
      %s38 = scalar_lea.hbm %s1, %s37
      %s39 = sshll.u32 [#allocation6], 4
      %s40 = int_to_ptr.vmem [resolvable:$true] %s39
      %45 = dma.hbm_to_vmem [thread:$0]  %s38, 256, %s40, [#allocation7], 128, 128, 8
    $region9: #{tpu_custom_call.1} parent=1 // pred_fallthru
      _
    // Predicated region
    $region10: #{tpu_custom_call.1} parent=1 // pred_check
      _
    $region11: #{tpu_custom_call.1} parent=1 // pred_check_branch
      %47 = sbr.rel (0) target = $region13
    $region12: #{tpu_custom_call.1} parent=1 // pred_region
      %48 = dma.done [#allocation4], 256
    $region13: #{tpu_custom_call.1} parent=1 // pred_fallthru
      _
    // Predicated region
    $region14: #{tpu_custom_call.1} parent=1 // pred_check
      _
    $region15: #{tpu_custom_call.1} parent=1 // pred_check_branch
      %50 = sbr.rel (0) target = $region17
    $region16: #{tpu_custom_call.1} parent=1 // pred_region
      %51 = dma.done [#allocation7], 256
    $region17: #{tpu_custom_call.1} parent=1 // pred_fallthru
      _
    %s52 = sadd.s32 0, 0
    %p53 = scmp.lt.s32.totalorder %s52, 0
    %s54 = scalar_select %p53, %s52, 0
    %s55 = smul.u32 2, %s54
    %s56 = sadd.s32 0, 0
    %p57 = scmp.lt.s32.totalorder %s56, 0
    %s58 = scalar_select %p57, %s56, 0
    %s59 = smul.u32 2, %s58
    %p60 = scmp.eq.s32.totalorder 0, 0
    // Predicated region
    $region18: #{tpu_custom_call.1} parent=1 // pred_check
      %p61 = pneg %p60
    $region19: #{tpu_custom_call.1} parent=1 // pred_check_branch
      %63 = sbr.rel (%p61) target = $region21
    $region20: #{tpu_custom_call.1} parent=1 // pred_region
      %64 = vst [vmem:[#allocation2] sm:$0xff] 0.0
    $region21: #{tpu_custom_call.1} parent=1 // pred_fallthru
      _
    %v65 = vld [vmem:[#allocation3] sm:$0xff]
    %v66 = vld [vmem:[#allocation3 + $0x8] sm:$0xff]
    %v67 = vld [vmem:[#allocation6] sm:$0xff]
    %v68 = vld [vmem:[#allocation6 + $0x8] sm:$0xff]
    %v69 = vand.u32 2147483647, %v65
    %v70 = vand.u32 2147483647, %v66
    %v71 = vsub.f32 0.0, %v69
    %v72 = vsub.f32 0.0, %v70
    %v73 = vmul.f32 %v71, 1.442695
    %v74 = vpow.pop %v73
    %v75 = vmul.f32 %v72, 1.442695
    %v76 = vpow.pop %v75
    %v77 = vmax.f32 %v65, 0.0
    %v78 = vmax.f32 %v66, 0.0
    %v79 = vmul.f32 %v65, %v67
    %v80 = vmul.f32 %v66, %v68
    %v81 = vsub.f32 %v77, %v79
    %v82 = vsub.f32 %v78, %v80
    %v83 = vadd.f32 %v74, 1.0
    %v84 = vlog2.pop %v83
    %v85 = vmul.f32 %v84, 0.6931472
    %v86 = vmul.f32 -0.5, %v74
    %v87 = vadd.f32 %v86, 1.0
    %v88 = vmul.f32 %v87, %v74
    %v89 = vand.u32 2147483647, %v74
    %vm90 = vcmp.lt.f32.partialorder %v89, 0.0004427343
    %v91 = vsel %vm90, %v88, %v85
    %v92 = vadd.f32 %v76, 1.0
    %v93 = vlog2.pop %v92
    %v94 = vmul.f32 %v93, 0.6931472
    %v95 = vmul.f32 -0.5, %v76
    %v96 = vadd.f32 %v95, 1.0
    %v97 = vmul.f32 %v96, %v76
    %v98 = vand.u32 2147483647, %v76
    %vm99 = vcmp.lt.f32.partialorder %v98, 0.0004427343
    %v100 = vsel %vm99, %v97, %v94
    %v101 = vadd.f32 %v81, %v91
    %v102 = vadd.f32 %v82, %v100
    %v103 = vadd.f32 %v74, 1.0
    %v104 = vadd.f32 %v76, 1.0
    %v105 = vrcp.pop %v103
    %v106 = vrcp.pop %v104
    %vm107 = vcmp.ge.f32.partialorder %v65, 0.0
    %vm108 = vcmp.ge.f32.partialorder %v66, 0.0
    %v109 = vmul.f32 %v74, %v105
    %v110 = vmul.f32 %v76, %v106
    %v111 = vsel %vm107, %v105, %v109
    %v112 = vsel %vm108, %v106, %v110
    %v113 = vmul.f32 %v67, -0.5
    %v114 = vmul.f32 %v68, -0.5
    %v115 = vadd.f32 %v113, 0.75
    %v116 = vadd.f32 %v114, 0.75
    %v117 = vsub.f32 %v67, %v111
    %v118 = vsub.f32 %v68, %v112
    %v119 = vand.u32 2147483647, %v117
    %v120 = vand.u32 2147483647, %v118
    %v121 = vrsqrt.pop %v119
    %v122 = vmul.f32 %v119, %v121
    %vm123 = vcmp.eq.f32.partialorder %v119, inf
    %v124 = vsel %vm123, %v119, %v122
    %vm125 = vcmp.eq.f32.partialorder %v119, 0.0
    %v126 = vand.u32 %v119, 2147483648
    %v127 = vsel %vm125, %v126, %v124
    %v128 = vrsqrt.pop %v120
    %v129 = vmul.f32 %v120, %v128
    %vm130 = vcmp.eq.f32.partialorder %v120, inf
    %v131 = vsel %vm130, %v120, %v129
    %vm132 = vcmp.eq.f32.partialorder %v120, 0.0
    %v133 = vand.u32 %v120, 2147483648
    %v134 = vsel %vm132, %v133, %v131
    %v135 = vmul.f32 %v119, %v127
    %v136 = vmul.f32 %v120, %v134
    %v137 = vmul.f32 %v101, %v115
    %v138 = vmul.f32 %v102, %v116
    %v139 = vmul.f32 %v137, %v135
    %v140 = vmul.f32 %v138, %v136
    %s141 = sadd.s32 0, 0
    %s142 = sadd.s32 %s141, 1
    %s143 = smul.u32 %s142, 16
    %p144 = scmp.gt.s32.totalorder %s143, 16
    %p145 = scmp.le.s32.totalorder %s143, 16
    // Predicated region
    $region22: #{tpu_custom_call.1} parent=1 // pred_check
      %p146 = pneg %p145
    $region23: #{tpu_custom_call.1} parent=1 // pred_check_branch
      %148 = sbr.rel (%p146) target = $region25
    $region24: #{tpu_custom_call.1} parent=1 // pred_region
      %v149 = vld [vmem:[#allocation2] sm:$0xff]
      %v150 = vadd.f32 %v139, %v140
      %v151 = vadd.f32 %v149, %v150
      %152 = vst [vmem:[#allocation2] sm:$0xff] %v151
    $region25: #{tpu_custom_call.1} parent=1 // pred_fallthru
      _
    // Predicated region
    $region26: #{tpu_custom_call.1} parent=1 // pred_check
      %p153 = pneg %p144
    $region27: #{tpu_custom_call.1} parent=1 // pred_check_branch
      %155 = sbr.rel (%p153) target = $region29
    $region28: #{tpu_custom_call.1} parent=1 // pred_region
      %s156 = smul.u32 %s141, 16
      %v157 = vlaneseq
      %v158 = vshrl.u32 %v157, 7
      %v159 = vadd.s32 %v158, 8
      %v160 = vstv %s156
      %v161 = vadd.s32 %v160, %v158
      %v162 = vadd.s32 %v160, %v159
      %vm163 = vcmp.lt.s32.totalorder %v161, 16
      %vm164 = vcmp.lt.s32.totalorder %v162, 16
      %v165 = vld [vmem:[#allocation2] sm:$0xff]
      %v166 = vsel %vm163, %v139, 0.0
      %v167 = vsel %vm164, %v140, 0.0
      %v168 = vadd.f32 %v166, %v167
      %v169 = vadd.f32 %v165, %v168
      %170 = vst [vmem:[#allocation2] sm:$0xff] %v169
    $region29: #{tpu_custom_call.1} parent=1 // pred_fallthru
      _
    // Predicated region
    $region30: #{tpu_custom_call.1} parent=1 // pred_check
      %p171 = pneg %p60
    $region31: #{tpu_custom_call.1} parent=1 // pred_check_branch
      %173 = sbr.rel (%p171) target = $region33
    $region32: #{tpu_custom_call.1} parent=1 // pred_region
      %v174 = vld [vmem:[#allocation2] sm:$0xff]
      %v175 = vmul.f32 %v174, 0.00048828125
      %176 = vst [vmem:[#allocation8] sm:$0xff] %v175
    $region33: #{tpu_custom_call.1} parent=1 // pred_fallthru
      _
    // Predicated region
    $region34: #{tpu_custom_call.1} parent=1 // pred_check
      _
    $region35: #{tpu_custom_call.1} parent=1 // pred_check_branch
      %178 = sbr.rel (0) target = $region37
    $region36: #{tpu_custom_call.1} parent=1 // pred_region
      %s180 = ssub.s32 128, 128
      %181 = vsyncadd [#allocation5], %s180
      %s183 = sshll.u32 [#allocation8], 4
      %s184 = int_to_ptr.vmem [resolvable:$true] %s183
      %186 = dma.vmem_to_hbm [thread:$0]  %s184, 128, %s2, [#allocation5]
    $region37: #{tpu_custom_call.1} parent=1 // pred_fallthru
      _
    // Predicated region
    $region38: #{tpu_custom_call.1} parent=1 // pred_check
      _
    $region39: #{tpu_custom_call.1} parent=1 // pred_check_branch
      %188 = sbr.rel (0) target = $region41
    $region40: #{tpu_custom_call.1} parent=1 // pred_region
      %189 = dma.done [#allocation5], 128
    $region41: #{tpu_custom_call.1} parent=1 // pred_fallthru
      _
    %190 = vsyncpa [#allocation4], 1
    %191 = vsyncpa [#allocation7], 1
    %192 = vsyncpa [#allocation5], 1

</llo_original>
